<compile_context>
chip_gen: v7x
topology: tpu7x:2x2x1
jax: 0.10.0
libtpu: 0.0.40
codegen_flags: <defaults>
</compile_context>

<pallas_src>
import functools

import jax
import jax.numpy as jnp
from jax import lax
from jax.experimental import pallas as pl
from jax.experimental.pallas import tpu as pltpu

_SH = (0.2820947917, 0.4886025119, 0.4886025119, 0.4886025119,
       1.0925484305, 1.0925484305, 0.3153915652, 1.0925484305, 0.5462742152)

# Block sizes (lanes = points/rays).  Per-point bytes: sdf ~44 B, shading
# ~1.1 KiB (dominated by the 8x32 corner rows).  2048-point shading blocks are
# ~2.2 MiB (x2 double buffering), comfortably inside the default scoped VMEM
# limit on v5e/v6e (32/128 MiB) and v7x (32/64 MiB).  Blocks are clamped down
# for small inputs by _block_and_pad.
_SDF_BLOCK = 4096
_REN_BLOCK = 2048
_RAY_BLOCK = 1024


# ----------------------------------------------------------------------------
# Kernel 1: quadric SDF -> exp(-logisticCoef * sdf) at the sdf sample points.
#   sv_ref: (7, B) gathered quadric coefficients     sp_ref: (3, B) points
#   exp_ref: (1, B) = exp(-coef * sdf)
# ----------------------------------------------------------------------------
def _sdf_kernel(sv_ref, sp_ref, exp_ref, *, reso, logistic_coef):
    px = sp_ref[0:1, :]
    py = sp_ref[1:2, :]
    pz = sp_ref[2:3, :]
    a0 = sv_ref[0:1, :] * px
    a1 = sv_ref[1:2, :] * py
    a2 = sv_ref[2:3, :] * pz
    a3 = sv_ref[3:4, :]
    a4 = sv_ref[4:5, :]
    a5 = sv_ref[5:6, :]
    a6 = sv_ref[6:7, :]
    num = (a0 + a3) * px + (a1 + a4) * py + (a2 + a5) * pz + a6
    den = jnp.sqrt((2.0 * a0 + a3) ** 2 + (2.0 * a1 + a4) ** 2
                   + (2.0 * a2 + a5) ** 2)
    sdf = num / den / float(reso)          # no eps floor, matches the reference
    exp_ref[...] = jnp.exp(-logistic_coef * sdf)


# ----------------------------------------------------------------------------
# Kernel 2: per render point: quadric normal, trilinear interpolation of the
# 32-channel render data, SH3 specular + diffuse/metallic composition.
#   rv_ref: (7, B)  rp_ref/view_ref: (3, B)  corners_ref: (8*32, B)
#   rgb_ref: (3, B)
# ----------------------------------------------------------------------------
def _shade_kernel(rv_ref, rp_ref, view_ref, corners_ref, rgb_ref):
    qx = rp_ref[0:1, :]
    qy = rp_ref[1:2, :]
    qz = rp_ref[2:3, :]

    # quadric gradient -> unit normal (F.normalize, eps = 1e-12)
    gx = 2.0 * rv_ref[0:1, :] * qx + rv_ref[3:4, :]
    gy = 2.0 * rv_ref[1:2, :] * qy + rv_ref[4:5, :]
    gz = 2.0 * rv_ref[2:3, :] * qz + rv_ref[5:6, :]
    norm = jnp.maximum(jnp.sqrt(gx * gx + gy * gy + gz * gz), 1e-12)
    ux, uy, uz = gx / norm, gy / norm, gz / norm

    # trilinear interpolation over the 8 gathered corner rows (same lerp
    # nesting/order as the reference to keep fp semantics)
    def corner(k):
        return corners_ref[k * 32:(k + 1) * 32, :]     # (32, B)

    def lerp(a, b, c):
        return (1.0 - c) * a + b * c

    b0 = lerp(lerp(corner(0), corner(1), qx), lerp(corner(2), corner(3), qx), qy)
    b1 = lerp(lerp(corner(4), corner(5), qx), lerp(corner(6), corner(7), qx), qy)
    data = lerp(b0, b1, qz)                            # (32, B)

    ao = data[31:32, :]
    diffuse = data[27:30, :]
    metallic = data[30:31, :]

    # reflection direction + SH3 irradiance
    vx = view_ref[0:1, :]
    vy = view_ref[1:2, :]
    vz = view_ref[2:3, :]
    vdotn = vx * ux + vy * uy + vz * uz
    rx = vx - ux * (2.0 * vdotn)
    ry = vy - uy * (2.0 * vdotn)
    rz = vz - uz * (2.0 * vdotn)
    x4 = rx * rz
    zz = rz * rz
    xx = rx * rx
    x5 = rx * ry
    x6 = 2.0 * ry * ry - zz - xx
    x7 = ry * rz
    x8 = zz - xx

    def coef(k):
        return data[3 * k:3 * k + 3, :]                # (3, B)

    spec = (_SH[0] * coef(0) + _SH[1] * coef(1) * rx + _SH[2] * coef(2) * ry
            + _SH[3] * coef(3) * rz + _SH[4] * coef(4) * x4
            + _SH[5] * coef(5) * x5 + _SH[6] * coef(6) * x6
            + _SH[7] * coef(7) * x7 + _SH[8] * coef(8) * x8)
    color = diffuse * (1.0 - metallic) + spec * metallic
    rgb_ref[...] = color * ao                          # single lane-dense store


# ----------------------------------------------------------------------------
# Kernel 3: ray compositing, vectorized across rays (rays on lanes).
#   e_ref   : (S+1, 1, B)  exp(-coef*sdf) at samples s0..s0+S of each ray
#   rgb_ref : (S,   3, B)  rgb at samples c0..c0+S-1 of each ray
#   cnt_ref : (1, B) int32 per-ray step count
#   out_ref : (3, B)       composited color per ray
# ----------------------------------------------------------------------------
def _ray_kernel(e_ref, rgb_ref, cnt_ref, out_ref):
    max_steps = rgb_ref.shape[0]
    nb = cnt_ref.shape[-1]
    cnt = cnt_ref[...]                                 # (1, B) int32

    def body(i, carry):
        t, col = carry
        e_prev = e_ref[i]                              # (1, B)
        e_next = e_ref[i + 1]                          # (1, B)
        alpha = jnp.clip((e_next - e_prev) / (1.0 + e_next), 0.0, 10.0)
        alpha = jnp.where(i < cnt, alpha, 0.0)         # mask past-the-end steps
        col = col + rgb_ref[i] * (alpha * t)           # (3, B)
        t = t * (1.0 - alpha)
        return t, col

    t0 = jnp.ones((1, nb), jnp.float32)
    c0 = jnp.zeros((3, nb), jnp.float32)
    _, col = lax.fori_loop(0, max_steps, body, (t0, c0),
                           unroll=max_steps <= 16)
    out_ref[...] = col


# ----------------------------------------------------------------------------
# Plain-JAX glue: prefix scans + gathers (equivalent to building sdfGrid)
# ----------------------------------------------------------------------------
def _scan_layers(layer, off):
    inc3 = 2.0 * layer[:-1] + 2.0 * layer[1:]
    a3 = jnp.concatenate([off[None], off + jnp.cumsum(inc3)])
    inc6 = 3.0 * layer[:-1] + layer[1:] + 2.0 * a3[:-1]
    a6 = jnp.concatenate([jnp.zeros((1,), jnp.float32), jnp.cumsum(inc6)])
    return a3, a6


def _quadric_gather(idx, params, reso):
    """sdfGrid.view(-1)[idx*7 + k] for k = 0..6, returned channel-major (7, N)."""
    xL, yL, zL = params['xLayer'], params['yLayer'], params['zLayer']
    offset = params['offset']
    a3x, a6x = _scan_layers(xL, offset[0])
    a4y, a6y = _scan_layers(yL, offset[1])
    a5z, a6z = _scan_layers(zL, offset[2])
    ix = idx % reso
    iy = (idx // reso) % reso
    iz = idx // (reso * reso)
    return jnp.stack([xL[ix], yL[iy], zL[iz],
                      a3x[ix], a4y[iy], a5z[iz],
                      offset[3] + a6x[ix] + a6y[iy] + a6z[iz]],
                     axis=0).astype(jnp.float32)


def _pad_lanes(x, n_pad, value=0.0):
    pad = n_pad - x.shape[-1]
    if pad <= 0:
        return x
    widths = [(0, 0)] * (x.ndim - 1) + [(0, pad)]
    return jnp.pad(x, widths, constant_values=value)


def _block_and_pad(n, max_block):
    blk = int(min(max_block, pl.cdiv(n, 128) * 128))
    n_pad = int(pl.cdiv(n, blk) * blk)
    return blk, n_pad


def render_grid_forward(params, inputs, *, reso, logistic_coef, max_steps=None):
    render_idx = inputs['renderIndexList'].astype(jnp.int32)
    sdf_idx = inputs['sdfIndexList'].astype(jnp.int32)
    render_pts = inputs['renderPointList'].astype(jnp.float32)
    sdf_pts = inputs['sdfPointList'].astype(jnp.float32)
    view = inputs['viewDirList'].astype(jnp.float32)
    rays = inputs['rayList'].astype(jnp.int32)

    n_sdf = sdf_pts.shape[0]
    n_ren = render_pts.shape[0]
    num_rays = rays.shape[0]

    # ---- glue: quadric-coefficient gathers, channel-major SoA (7, N) --------
    sdf_vals = _quadric_gather(sdf_idx, params, reso)     # (7, Nsdf)
    ren_vals = _quadric_gather(render_idx, params, reso)  # (7, Nren)

    # ---- glue: trilinear corner rows of the 32-channel render data ----------
    # Neighbor strides (reso, reso*reso) follow the PyTorch reference verbatim,
    # even though renderData has (reso+1)^3 rows.
    i000 = render_idx
    i010 = i000 + reso
    i100 = i000 + reso * reso
    i110 = i100 + reso
    rows = jnp.stack([i000, i000 + 1, i010, i010 + 1,
                      i100, i100 + 1, i110, i110 + 1], axis=0)      # (8, Nren)
    corners = params['renderData'][rows]                            # (8, Nren, 32)
    corners = jnp.transpose(corners, (0, 2, 1)).reshape(8 * 32, n_ren)

    # ---------------- kernel 1: sdf -> exp(-coef * sdf) ----------------------
    sblk, n_sdf_pad = _block_and_pad(n_sdf, _SDF_BLOCK)
    sv_p = _pad_lanes(sdf_vals, n_sdf_pad, 1.0)    # coeff pad = 1 avoids 0/0
    sp_p = _pad_lanes(sdf_pts.T, n_sdf_pad, 0.0)
    exp_sdf = pl.pallas_call(
        functools.partial(_sdf_kernel, reso=reso, logistic_coef=logistic_coef),
        out_shape=jax.ShapeDtypeStruct((1, n_sdf_pad), jnp.float32),
        grid=(n_sdf_pad // sblk,),
        in_specs=[pl.BlockSpec((7, sblk), lambda i: (0, i)),
                  pl.BlockSpec((3, sblk), lambda i: (0, i))],
        out_specs=pl.BlockSpec((1, sblk), lambda i: (0, i)),
        compiler_params=pltpu.CompilerParams(
            dimension_semantics=("parallel",)),
    )(sv_p, sp_p)

    # ---------------- kernel 2: shading at render points ---------------------
    rblk, n_ren_pad = _block_and_pad(n_ren, _REN_BLOCK)
    rv_p = _pad_lanes(ren_vals, n_ren_pad, 1.0)
    rp_p = _pad_lanes(render_pts.T, n_ren_pad, 0.0)
    vw_p = _pad_lanes(view.T, n_ren_pad, 0.0)
    cr_p = _pad_lanes(corners, n_ren_pad, 0.0)
    rgbs = pl.pallas_call(
        _shade_kernel,
        out_shape=jax.ShapeDtypeStruct((3, n_ren_pad), jnp.float32),
        grid=(n_ren_pad // rblk,),
        in_specs=[pl.BlockSpec((7, rblk), lambda i: (0, i)),
                  pl.BlockSpec((3, rblk), lambda i: (0, i)),
                  pl.BlockSpec((3, rblk), lambda i: (0, i)),
                  pl.BlockSpec((8 * 32, rblk), lambda i: (0, i))],
        out_specs=pl.BlockSpec((3, rblk), lambda i: (0, i)),
        compiler_params=pltpu.CompilerParams(
            dimension_semantics=("parallel",)),
    )(rv_p, rp_p, vw_p, cr_p)

    # ---------------- kernel 3: ray compositing ------------------------------
    s0, cnt, c0 = rays[:, 1], rays[:, 2], rays[:, 3]
    if max_steps is None:
        # rayList is concrete outside of jit; read the max step count.
        max_steps = int(jax.device_get(jnp.max(cnt)))
    max_steps = max(int(max_steps), 1)

    # Per-ray sample slabs (glue gathers; indices clamped to the valid range,
    # masked per-step inside the kernel).
    steps_e = jnp.arange(max_steps + 1, dtype=jnp.int32)
    idx_e = jnp.clip(s0[None, :] + steps_e[:, None], 0, n_sdf - 1)   # (S+1, R)
    e_slab = exp_sdf[0, :n_sdf][idx_e][:, None, :]                   # (S+1,1,R)

    steps_c = jnp.arange(max_steps, dtype=jnp.int32)
    idx_c = jnp.clip(c0[None, :] + steps_c[:, None], 0, n_ren - 1)   # (S, R)
    rgb_slab = jnp.transpose(rgbs[:, :n_ren][:, idx_c], (1, 0, 2))   # (S, 3, R)

    ray_blk, n_ray_pad = _block_and_pad(num_rays, _RAY_BLOCK)
    e_slab = _pad_lanes(e_slab, n_ray_pad, 0.0)
    rgb_slab = _pad_lanes(rgb_slab, n_ray_pad, 0.0)
    cnt_p = _pad_lanes(cnt[None, :], n_ray_pad, 0)

    colors = pl.pallas_call(
        _ray_kernel,
        out_shape=jax.ShapeDtypeStruct((3, n_ray_pad), jnp.float32),
        grid=(n_ray_pad // ray_blk,),
        in_specs=[pl.BlockSpec((max_steps + 1, 1, ray_blk),
                               lambda i: (0, 0, i)),
                  pl.BlockSpec((max_steps, 3, ray_blk),
                               lambda i: (0, 0, i)),
                  pl.BlockSpec((1, ray_blk), lambda i: (0, i))],
        out_specs=pl.BlockSpec((3, ray_blk), lambda i: (0, i)),
        compiler_params=pltpu.CompilerParams(
            dimension_semantics=("parallel",)),
    )(e_slab, rgb_slab, cnt_p)

    ray_colors = colors[:, :num_rays].T                              # (R, 3)

    # TODO(synk): the PyTorch reference writes image[0] inside the ray loop and
    # leaves the remaining rows of torch.empty uninitialized; we reproduce the
    # deterministic part (row 0 = last ray's color) and zero the rest.
    image = jnp.zeros((num_rays, 3), jnp.float32).at[0].set(
        ray_colors[num_rays - 1])
    return image


if __name__ == "__main__":
    reso = 8
    logistic_coef = 5.0
    n_sdf, n_ren = 16, 8

    # Deterministic parameter init mirroring the module __init__.
    c = 1.0 - reso
    radius = 1.0 * reso
    params = {
        'xLayer': jnp.ones((reso,), jnp.float32),
        'yLayer': jnp.ones((reso,), jnp.float32),
        'zLayer': jnp.ones((reso,), jnp.float32),
        'offset': jnp.array([2 * c, 2 * c, 2 * c,
                             3 * c * c - radius * radius], jnp.float32),
        'renderData': jnp.full(((reso + 1) ** 3, 32), 0.5, jnp.float32),
    }

    key = jax.random.PRNGKey(0)
    k1, k2, k3, k4, k5 = jax.random.split(key, 5)
    inputs = {
        'renderIndexList': jax.random.randint(k1, (n_ren,), 0, reso ** 3,
                                              jnp.int32),
        'sdfIndexList': jax.random.randint(k2, (n_sdf,), 0, reso ** 3,
                                           jnp.int32),
        'renderPointList': jax.random.uniform(k3, (n_ren, 3), jnp.float32),
        'sdfPointList': jax.random.uniform(k4, (n_sdf, 3), jnp.float32),
        'viewDirList': jax.random.uniform(k5, (n_ren, 3), jnp.float32),
        # rayList rows: [unused, sdf_start, step_count, rgb_start]
        'rayList': jnp.array([[0, 0, 4, 0],
                              [0, 5, 3, 3],
                              [0, 10, 5, 2]], jnp.int32),
    }

    image = render_grid_forward(params, inputs, reso=reso,
                                logistic_coef=logistic_coef)
    jax.block_until_ready(image)
    print("KERNEL_OK")
</pallas_src>

<mosaic_0001>
module attributes {stable_mosaic.version = 11 : i64} {
  func.func @_sdf_kernel(%arg0: i32, %arg1: memref<7x128xf32, #tpu.memory_space<vmem>>, %arg2: memref<3x128xf32, #tpu.memory_space<vmem>>, %arg3: memref<1x128xf32, #tpu.memory_space<vmem>>) attributes {dimension_semantics = [#tpu.dimension_semantics<parallel>], iteration_bounds = array<i64: 1>, scalar_prefetch = 0 : i64, scratch_operands = 0 : i64, tpu.core_type = #tpu.core_type<tc>, window_params = [{transform_indices = @transform_0, window_bounds = array<i64: 7, 128>}, {transform_indices = @transform_1, window_bounds = array<i64: 3, 128>}, {transform_indices = @transform_2, window_bounds = array<i64: 1, 128>}]} {
    %c0 = arith.constant 0 : index
    %c0_0 = arith.constant 0 : index
    %0 = vector.load %arg2[%c0, %c0_0] : memref<3x128xf32, #tpu.memory_space<vmem>>, vector<1x128xf32>
    %c1 = arith.constant 1 : index
    %c0_1 = arith.constant 0 : index
    %1 = vector.load %arg2[%c1, %c0_1] : memref<3x128xf32, #tpu.memory_space<vmem>>, vector<1x128xf32>
    %c2 = arith.constant 2 : index
    %c0_2 = arith.constant 0 : index
    %2 = vector.load %arg2[%c2, %c0_2] : memref<3x128xf32, #tpu.memory_space<vmem>>, vector<1x128xf32>
    %c0_3 = arith.constant 0 : index
    %c0_4 = arith.constant 0 : index
    %3 = vector.load %arg1[%c0_3, %c0_4] : memref<7x128xf32, #tpu.memory_space<vmem>>, vector<1x128xf32>
    %4 = arith.mulf %3, %0 : vector<1x128xf32>
    %c1_5 = arith.constant 1 : index
    %c0_6 = arith.constant 0 : index
    %5 = vector.load %arg1[%c1_5, %c0_6] : memref<7x128xf32, #tpu.memory_space<vmem>>, vector<1x128xf32>
    %6 = arith.mulf %5, %1 : vector<1x128xf32>
    %c2_7 = arith.constant 2 : index
    %c0_8 = arith.constant 0 : index
    %7 = vector.load %arg1[%c2_7, %c0_8] : memref<7x128xf32, #tpu.memory_space<vmem>>, vector<1x128xf32>
    %8 = arith.mulf %7, %2 : vector<1x128xf32>
    %c3 = arith.constant 3 : index
    %c0_9 = arith.constant 0 : index
    %9 = vector.load %arg1[%c3, %c0_9] : memref<7x128xf32, #tpu.memory_space<vmem>>, vector<1x128xf32>
    %c4 = arith.constant 4 : index
    %c0_10 = arith.constant 0 : index
    %10 = vector.load %arg1[%c4, %c0_10] : memref<7x128xf32, #tpu.memory_space<vmem>>, vector<1x128xf32>
    %c5 = arith.constant 5 : index
    %c0_11 = arith.constant 0 : index
    %11 = vector.load %arg1[%c5, %c0_11] : memref<7x128xf32, #tpu.memory_space<vmem>>, vector<1x128xf32>
    %c6 = arith.constant 6 : index
    %c0_12 = arith.constant 0 : index
    %12 = vector.load %arg1[%c6, %c0_12] : memref<7x128xf32, #tpu.memory_space<vmem>>, vector<1x128xf32>
    %13 = arith.addf %4, %9 : vector<1x128xf32>
    %14 = arith.mulf %13, %0 : vector<1x128xf32>
    %15 = arith.addf %6, %10 : vector<1x128xf32>
    %16 = arith.mulf %15, %1 : vector<1x128xf32>
    %17 = arith.addf %14, %16 : vector<1x128xf32>
    %18 = arith.addf %8, %11 : vector<1x128xf32>
    %19 = arith.mulf %18, %2 : vector<1x128xf32>
    %20 = arith.addf %17, %19 : vector<1x128xf32>
    %21 = arith.addf %20, %12 : vector<1x128xf32>
    %cst = arith.constant 2.000000e+00 : f32
    %22 = vector.broadcast %cst : f32 to vector<1x128xf32>
    %23 = arith.mulf %22, %4 : vector<1x128xf32>
    %24 = arith.addf %23, %9 : vector<1x128xf32>
    %25 = arith.mulf %24, %24 : vector<1x128xf32>
    %cst_13 = arith.constant 2.000000e+00 : f32
    %26 = vector.broadcast %cst_13 : f32 to vector<1x128xf32>
    %27 = arith.mulf %26, %6 : vector<1x128xf32>
    %28 = arith.addf %27, %10 : vector<1x128xf32>
    %29 = arith.mulf %28, %28 : vector<1x128xf32>
    %30 = arith.addf %25, %29 : vector<1x128xf32>
    %cst_14 = arith.constant 2.000000e+00 : f32
    %31 = vector.broadcast %cst_14 : f32 to vector<1x128xf32>
    %32 = arith.mulf %31, %8 : vector<1x128xf32>
    %33 = arith.addf %32, %11 : vector<1x128xf32>
    %34 = arith.mulf %33, %33 : vector<1x128xf32>
    %35 = arith.addf %30, %34 : vector<1x128xf32>
    %36 = math.sqrt %35 : vector<1x128xf32>
    %37 = arith.divf %21, %36 : vector<1x128xf32>
    %cst_15 = arith.constant 8.000000e+00 : f32
    %38 = vector.broadcast %cst_15 : f32 to vector<1x128xf32>
    %39 = arith.divf %37, %38 : vector<1x128xf32>
    %cst_16 = arith.constant -5.000000e+00 : f32
    %40 = vector.broadcast %cst_16 : f32 to vector<1x128xf32>
    %41 = arith.mulf %40, %39 : vector<1x128xf32>
    %42 = math.exp %41 : vector<1x128xf32>
    %c0_17 = arith.constant 0 : index
    %c0_18 = arith.constant 0 : index
    %43 = vector.load %arg3[%c0_17, %c0_18] : memref<1x128xf32, #tpu.memory_space<vmem>>, vector<1x128xf32>
    tpu.vector_store %arg3[%c0_17, %c0_18], %42 {strides = array<i32>} : memref<1x128xf32, #tpu.memory_space<vmem>>, vector<1x128xf32>,
    return
  }
  func.func @transform_0(%arg0: i32) -> (i32, i32) {
    %c0_i32 = arith.constant 0 : i32
    %c0_i32_0 = arith.constant 0 : i32
    return %c0_i32, %arg0 : i32, i32
  }
  func.func @transform_1(%arg0: i32) -> (i32, i32) {
    %c0_i32 = arith.constant 0 : i32
    %c0_i32_0 = arith.constant 0 : i32
    return %c0_i32, %arg0 : i32, i32
  }
  func.func @transform_2(%arg0: i32) -> (i32, i32) {
    %c0_i32 = arith.constant 0 : i32
    %c0_i32_0 = arith.constant 0 : i32
    return %c0_i32, %arg0 : i32, i32
  }
}

</mosaic_0001>

<llo_original>
// kernel: tpu_custom_call.1
$region0: #{tpu_custom_call.1}
  #allocation0 [shape = 'u32[]', space=smem, size = 0x4, offset = 0x4, fixed_abs, tag = 'smem constant byte address 0x4 - core index']
  #allocation1 [shape = 'u32[144,128]{1,0:T(1,128)}', space=vmem, size = 0x12000, scoped, tag = 'internal scratch']
  %s0 = inlined_call_operand.hbm [shape: f32[7,128], index: 0, kind: input, shape index: {}]
  %s1 = inlined_call_operand.hbm [shape: f32[3,128], index: 1, kind: input, shape index: {}]
  %s2 = inlined_call_operand.hbm [shape: f32[1,128], index: 2, kind: output, shape index: {}]
  %s3 = sld [smem:[#allocation0]]
  $region26: #{tpu_custom_call.1} parent=0
    _
  %s5 = ssub.s32 1, %s3
  %s6 = scalar_select 0, %s5, %s3
  $region1: #{tpu_custom_call.1} parent=0
    #allocation2 [shape = 'u8[4096]{0}', space=vmem, size = 0x1000, scoped, tag = 'input window, operand 0, single buffered']
    #allocation3 [shape = 's32[1]{0}', space=sflag, size = 0x4, scoped, tag = 'scoped memory for tpu_custom_call.1']
    #allocation4 [shape = 's32[1]{0}', space=sflag, size = 0x4, scoped, tag = 'scoped memory for tpu_custom_call.1']
    #allocation5 [shape = 'u8[2048]{0}', space=vmem, size = 0x800, scoped, tag = 'input window, operand 1, single buffered']
    #allocation6 [shape = 's32[1]{0}', space=sflag, size = 0x4, scoped, tag = 'scoped memory for tpu_custom_call.1']
    #allocation7 [shape = 'u8[512]{0}', space=vmem, size = 0x400, scoped, tag = 'output window, operand 0, single buffered']
    %7 = vsyncpa [#allocation3], 0
    %8 = vsyncpa [#allocation6], 0
    %9 = vsyncpa [#allocation4], 0
    // Predicated region
    $region2: #{tpu_custom_call.1} parent=1 // pred_check
      _
    $region3: #{tpu_custom_call.1} parent=1 // pred_check_branch
      %11 = sbr.rel (0) target = $region5
    $region4: #{tpu_custom_call.1} parent=1 // pred_region
      %s13 = ssub.s32 128, 128
      %14 = vsyncadd [#allocation3], %s13
      %s16 = sshll.u32 [#allocation2], 4
      %s17 = int_to_ptr.vmem [resolvable:$true] %s16
      %19 = dma.hbm_to_vmem [thread:$0]  %s0, 128, %s17, [#allocation3]
    $region5: #{tpu_custom_call.1} parent=1 // pred_fallthru
      _
    // Predicated region
    $region6: #{tpu_custom_call.1} parent=1 // pred_check
      _
    $region7: #{tpu_custom_call.1} parent=1 // pred_check_branch
      %21 = sbr.rel (0) target = $region9
    $region8: #{tpu_custom_call.1} parent=1 // pred_region
      %s23 = ssub.s32 64, 64
      %24 = vsyncadd [#allocation6], %s23
      %s26 = sshll.u32 [#allocation5], 4
      %s27 = int_to_ptr.vmem [resolvable:$true] %s26
      %29 = dma.hbm_to_vmem [thread:$0]  %s1, 64, %s27, [#allocation6]
    $region9: #{tpu_custom_call.1} parent=1 // pred_fallthru
      _
    // Predicated region
    $region10: #{tpu_custom_call.1} parent=1 // pred_check
      _
    $region11: #{tpu_custom_call.1} parent=1 // pred_check_branch
      %31 = sbr.rel (0) target = $region13
    $region12: #{tpu_custom_call.1} parent=1 // pred_region
      %32 = dma.done [#allocation3], 128
    $region13: #{tpu_custom_call.1} parent=1 // pred_fallthru
      _
    // Predicated region
    $region14: #{tpu_custom_call.1} parent=1 // pred_check
      _
    $region15: #{tpu_custom_call.1} parent=1 // pred_check_branch
      %34 = sbr.rel (0) target = $region17
    $region16: #{tpu_custom_call.1} parent=1 // pred_region
      %35 = dma.done [#allocation6], 64
    $region17: #{tpu_custom_call.1} parent=1 // pred_fallthru
      _
    %v36 = vld [vmem:[#allocation5] sm:$0x1]
    %v37 = vld [vmem:[#allocation5 + $0x1] sm:$0x1]
    %v38 = vld [vmem:[#allocation5 + $0x2] sm:$0x1]
    %v39 = vld [vmem:[#allocation2] sm:$0x1]
    %v40 = vmul.f32 %v39, %v36
    %v41 = vld [vmem:[#allocation2 + $0x1] sm:$0x1]
    %v42 = vmul.f32 %v41, %v37
    %v43 = vld [vmem:[#allocation2 + $0x2] sm:$0x1]
    %v44 = vmul.f32 %v43, %v38
    %v45 = vld [vmem:[#allocation2 + $0x3] sm:$0x1]
    %v46 = vld [vmem:[#allocation2 + $0x4] sm:$0x1]
    %v47 = vld [vmem:[#allocation2 + $0x5] sm:$0x1]
    %v48 = vld [vmem:[#allocation2 + $0x6] sm:$0x1]
    %v49 = vadd.f32 %v40, %v45
    %v50 = vmul.f32 %v49, %v36
    %v51 = vadd.f32 %v42, %v46
    %v52 = vmul.f32 %v51, %v37
    %v53 = vadd.f32 %v50, %v52
    %v54 = vadd.f32 %v44, %v47
    %v55 = vmul.f32 %v54, %v38
    %v56 = vadd.f32 %v53, %v55
    %v57 = vadd.f32 %v56, %v48
    %v58 = vmul.f32 %v40, 2.0
    %v59 = vadd.f32 %v58, %v45
    %v60 = vmul.f32 %v59, %v59
    %v61 = vmul.f32 %v42, 2.0
    %v62 = vadd.f32 %v61, %v46
    %v63 = vmul.f32 %v62, %v62
    %v64 = vadd.f32 %v60, %v63
    %v65 = vmul.f32 %v44, 2.0
    %v66 = vadd.f32 %v65, %v47
    %v67 = vmul.f32 %v66, %v66
    %v68 = vadd.f32 %v64, %v67
    %v69 = vrsqrt.pop %v68
    %v70 = vmul.f32 %v68, %v69
    %vm71 = vcmp.eq.f32.partialorder %v68, inf
    %v72 = vsel %vm71, %v68, %v70
    %vm73 = vcmp.eq.f32.partialorder %v68, 0.0
    %v74 = vand.u32 %v68, 2147483648
    %v75 = vsel %vm73, %v74, %v72
    %v76 = vrcp.pop %v75
    %v77 = vmul.f32 %v57, %v76
    %v78 = vrcp.pop 8.0
    %v79 = vmul.f32 %v77, %v78
    %v80 = vmul.f32 %v79, -5.0
    %v81 = vmul.f32 %v80, 1.442695
    %v82 = vpow.pop %v81
    %83 = vst [vmem:[#allocation7] sm:$0x1] %v82
    // Predicated region
    $region18: #{tpu_custom_call.1} parent=1 // pred_check
      _
    $region19: #{tpu_custom_call.1} parent=1 // pred_check_branch
      %85 = sbr.rel (0) target = $region21
    $region20: #{tpu_custom_call.1} parent=1 // pred_region
      %s87 = ssub.s32 16, 16
      %88 = vsyncadd [#allocation4], %s87
      %s90 = sshll.u32 [#allocation7], 4
      %s91 = int_to_ptr.vmem [resolvable:$true] %s90
      %93 = dma.vmem_to_hbm [thread:$0]  %s91, 16, %s2, [#allocation4]
    $region21: #{tpu_custom_call.1} parent=1 // pred_fallthru
      _
    // Predicated region
    $region22: #{tpu_custom_call.1} parent=1 // pred_check
      _
    $region23: #{tpu_custom_call.1} parent=1 // pred_check_branch
      %95 = sbr.rel (0) target = $region25
    $region24: #{tpu_custom_call.1} parent=1 // pred_region
      %96 = dma.done [#allocation4], 16
    $region25: #{tpu_custom_call.1} parent=1 // pred_fallthru
      _
    %97 = vsyncpa [#allocation3], 1
    %98 = vsyncpa [#allocation6], 1
    %99 = vsyncpa [#allocation4], 1

</llo_original>
